<compile_context>
chip_gen: v6e
topology: v6e:2x2x1
jax: 0.10.0
libtpu: 0.0.40
codegen_flags: <defaults>
</compile_context>

<pallas_src>
import jax
import jax.numpy as jnp
from jax.experimental import pallas as pl
from jax.experimental.pallas import tpu as pltpu

_LANE = 128              # TPU lane width; keep the last dim a multiple of this.
_MAX_LANE_WIDTH = 4096   # Widen the lane dim up to this (per perf feedback).


def _hbm_copy_kernel(x_hbm_ref, o_hbm_ref, sem):
    # Direct HBM -> HBM DMA of the whole slab: no VMEM staging, no vld/vst.
    cp = pltpu.make_async_copy(x_hbm_ref, o_hbm_ref, sem)
    cp.start()
    cp.wait()


def _lane_dense_view_shape(total: int) -> tuple[int, int] | None:
    """Widest lane-dense 2-D shape (rows, width) with width a multiple of 128."""
    if total == 0 or total % _LANE != 0:
        return None
    width = _LANE
    while width * 2 <= _MAX_LANE_WIDTH and total % (width * 2) == 0:
        width *= 2
    return (total // width, width)


def pallas_identity_copy(x: jax.Array) -> jax.Array:
    """Identity copy of `x` as a single HBM->HBM DMA Pallas TPU kernel.

    Kept only for the standalone self-test / benchmarking; it is NOT called
    from AudioAnalysisModel.forward(), which (like the reference) does no work.
    """
    orig_shape = x.shape
    total = x.size

    shape2d = _lane_dense_view_shape(total)
    if shape2d is not None:
        # Free metadata-only reshape of a contiguous array to a wide,
        # lane-dense slab -> one long contiguous DMA burst.
        x_view = x.reshape(shape2d)
    else:
        # TODO(synk): element counts not a multiple of 128 (or empty arrays)
        # are copied in their original shape; still a single whole-array DMA.
        x_view = x

    out = pl.pallas_call(
        _hbm_copy_kernel,
        out_shape=jax.ShapeDtypeStruct(x_view.shape, x_view.dtype),
        # Both operands stay in HBM; the kernel gets raw refs and issues the DMA.
        in_specs=[pl.BlockSpec(memory_space=pl.ANY)],
        out_specs=pl.BlockSpec(memory_space=pl.ANY),
        scratch_shapes=[pltpu.SemaphoreType.DMA(())],
    )(x_view)

    return out.reshape(orig_shape)


class AudioAnalysisModel:
    """JAX/Pallas port of the (empty) PyTorch AudioAnalysisModel."""

    def __init__(self):
        # The PyTorch __init__ registers no parameters.
        pass

    def forward(self, x):
        # TODO(synk): reference forward() body is `pass` -> no computation,
        # returns None.  Per the performance review, do NOT run any kernel
        # here; the Pallas identity-copy kernel exists only for the __main__
        # self-test.
        return None

    def __call__(self, x):
        return self.forward(x)


if __name__ == "__main__":
    key = jax.random.PRNGKey(0)
    # Small NCHW synthetic input consistent with an audio-spectrogram style
    # model: batch=2, channels=4, H=16 (freq), W=16 (time).
    x = jax.random.normal(key, (2, 4, 16, 16), dtype=jnp.float32)

    # --- Kernel self-test (standalone; not part of forward()) ---------------
    y = pallas_identity_copy(x)
    jax.block_until_ready(y)
    assert y.shape == x.shape and y.dtype == x.dtype
    assert bool(jnp.all(y == x))

    # Also make sure it compiles and runs correctly under jit.
    y_jit = jax.jit(pallas_identity_copy)(x)
    jax.block_until_ready(y_jit)
    assert bool(jnp.all(y_jit == x))

    # --- Module forward: matches the reference semantics (returns None) -----
    model = AudioAnalysisModel()
    out = model(x)
    assert out is None

    print("KERNEL_OK")
</pallas_src>

<mosaic_0001>
module attributes {stable_mosaic.version = 11 : i64} {
  func.func @_hbm_copy_kernel(%arg0: memref<1x2048xf32, #tpu.memory_space<any>>, %arg1: memref<1x2048xf32, #tpu.memory_space<any>>, %arg2: memref<!tpu.dma_semaphore, #tpu.memory_space<semaphore_mem>>) attributes {dimension_semantics = [], scalar_prefetch = 0 : i64, scratch_operands = 1 : i64, tpu.core_type = #tpu.core_type<tc>} {
    tpu.enqueue_dma source(%arg0 : memref<1x2048xf32, #tpu.memory_space<any>>) target(%arg1 : memref<1x2048xf32, #tpu.memory_space<any>>) target_semaphore(%arg2 : memref<!tpu.dma_semaphore, #tpu.memory_space<semaphore_mem>>)
    tpu.wait_dma2 semaphore(%arg2 : memref<!tpu.dma_semaphore, #tpu.memory_space<semaphore_mem>>) src(%arg0 : memref<1x2048xf32, #tpu.memory_space<any>>) dst(%arg1 : memref<1x2048xf32, #tpu.memory_space<any>>)
    return
  }
}

</mosaic_0001>

<llo_original>
// kernel: tpu_custom_call.1
$region0: #{tpu_custom_call.1}
  #allocation0 [shape = 'u32[]', space=smem, size = 0x4, offset = 0x4, fixed_abs, tag = 'smem constant byte address 0x4 - core index']
  #allocation1 [shape = 'u32[144,128]{1,0:T(1,128)}', space=vmem, size = 0x12000, scoped, tag = 'internal scratch']
  #allocation2 [shape = 's32[1]{0}', space=sflag, size = 0x4, scoped, tag = 'scratch operand']
  #allocation3 [shape = 's32[]', space=sflag, size = 0x4, offset = 0, fixed_abs, tag = 'sflag constant byte address 0x0 - dummy sync flag']
  #allocation4 [shape = 'u32[0]{0}', space=smem, size = 0, offset = 0, fixed_abs, tag = 'smem constant byte address 0x0 - null']
  %s0 = inlined_call_operand.hbm [shape: f32[1,2048], index: 0, kind: input, shape index: {}]
  %s1 = inlined_call_operand.hbm [shape: f32[1,2048], index: 1, kind: output, shape index: {}]
  %s2 = sld [smem:[#allocation0]]
  $region2: #{tpu_custom_call.1} parent=0
    _
  %s4 = ssub.s32 1, %s2
  %s5 = scalar_select 0, %s4, %s2
  %s7 = sshll.u32 1, 14
  %s8 = sxor.u32 4294967295, %s7
  %12 = dma.general %s0, 256, %s1, [#allocation2], 131072, [#allocation4], 0, 0
  %s13 = smul.u32 1, 16
  %s14 = sshll.u32 %s13, 4
  %15 = dma.done [#allocation2], %s14
  %16 = vsyncmov [#allocation2]
  %s17 = vpop.sfrf %16
  %p18 = scmp.eq.s32.totalorder %s17, 0
  %p19 = pneg %p18
  %21 = shalt.err (%p19)

</llo_original>
